<compile_context>
chip_gen: v5e
topology: v5e:2x2
jax: 0.10.0
libtpu: 0.0.40
codegen_flags: <defaults>
</compile_context>

<pallas_src>
import functools

import jax
import jax.numpy as jnp
from jax.experimental import pallas as pl
from jax.experimental.pallas import tpu as pltpu


def _round_up(x, m):
    return ((x + m - 1) // m) * m


def _lane_divisors(p128):
    """All multiples of 128 that divide p128 (ascending)."""
    m = p128 // 128
    return [128 * d for d in range(1, m + 1) if m % d == 0]


def _conv1x1_bn_silu_kernel(x_ref, w_ref, s_ref, o_ref):
    # x_ref: (NB, Cin, TP)   pixel tile, lane axis = spatial (NCHW-native)
    # w_ref: (TCo, Cin)      BN-folded 1x1 conv weight tile
    # s_ref: (TCo, 1)        folded conv-bias + BN shift (f32)
    # o_ref: (NB, TCo, TP)   output tile (lane-dense store)
    w = w_ref[...]
    s = s_ref[...]
    for b in range(x_ref.shape[0]):                 # static, small -> unrolled
        acc = jnp.dot(w, x_ref[b], preferred_element_type=jnp.float32)  # MXU
        y = acc + s
        # SiLU: explicit 1/(1+exp(-y)) keeps exp + reciprocal on the EUP slot
        # and avoids jax.nn.sigmoid's select ops.  (pl.reciprocal(..., approx=
        # True) is a further EUP-only option if reduced precision is OK.)
        sig = pl.reciprocal(1.0 + jnp.exp(-y))
        o_ref[b] = (y * sig).astype(o_ref.dtype)


@functools.partial(jax.jit, static_argnames=("stride", "tile_p", "tile_cout"))
def conv1x1_forward(x, conv_w, conv_b, bn_gamma, bn_beta, bn_mean, bn_var,
                    *, stride=1, eps=1e-5, tile_p=None, tile_cout=None):
    """x: (N, Cin, H, W) NCHW.  conv_w: (Cout, Cin, 1, 1).  Returns NCHW."""
    n, cin, h, w = x.shape
    cout = conv_w.shape[0]

    if stride > 1:
        # TODO(synk): fold the stride into the input BlockSpec index math
        # (input row = out_row * stride, lane stride via pl.ds) to remove this
        # extra XLA gather pass; it is a no-op for stride == 1.
        x = x[:, :, ::stride, ::stride]
    ho, wo = x.shape[2], x.shape[3]
    p = ho * wo

    # NCHW-native view (N, Cin, Ho*Wo): contiguous reshape, no transpose.
    x3d = x.reshape(n, cin, p)
    isz = jnp.dtype(x.dtype).itemsize

    # ---- Per-generation VMEM budget (v5e/v6e ~96 MiB, v7x ~48 MiB). --------
    try:
        vmem_cap = int(getattr(pltpu.get_tpu_info(), "vmem_capacity_bytes"))
    except Exception:
        vmem_cap = 64 << 20
    vmem_limit = max(32 << 20, (vmem_cap * 3) // 4)
    tile_budget = vmem_limit - (4 << 20)   # headroom for f32 temps / scratch

    def step_bytes(nb_, tco_, tp_):
        # Double-buffered pipeline footprint of one grid step.
        return 2 * (nb_ * cin * tp_ * isz       # x tile
                    + nb_ * tco_ * tp_ * isz    # out tile
                    + tco_ * cin * isz          # weight tile
                    + tco_ * 4)                 # shift (f32)

    # ---- Spatial padding only to the 128-lane granule. ---------------------
    p128 = _round_up(p, 128)

    # ---- Cout tiling: OFF by default (one j tile -> x read from HBM once). -
    if tile_cout is not None:
        tco = cout if tile_cout >= cout else max(8, (int(tile_cout) // 8) * 8)
    elif step_bytes(1, cout, 128) <= tile_budget:
        tco = cout
    else:
        tco = 128                               # MXU-column aligned
        while 2 * tco < cout and step_bytes(1, 2 * tco, 128) <= tile_budget:
            tco *= 2
    cout_pad = _round_up(cout, tco)

    # ---- Spatial tile: smallest 128-multiple divisor of p128 that reaches
    # ~2 MiB of activation bytes per step (else the largest that fits VMEM). -
    target = 2 << 20
    denom = 2 * (cin * isz + tco * isz)
    tp_vmem = (tile_budget - 2 * tco * (cin * isz + 4)) // denom
    tp_vmem = max(128, (tp_vmem // 128) * 128)
    cands = [c for c in _lane_divisors(p128) if c <= tp_vmem] or [128]
    if tile_p is not None:
        want = max(128, (int(tile_p) // 128) * 128)
        tp = max([c for c in cands if c <= want] or [cands[0]])
    else:
        big = [c for c in cands if cin * c * isz >= target]
        tp = big[0] if big else cands[-1]

    # ---- Batch blocking: amortize per-step overhead on small-spatial layers.
    nb = 1
    if tile_p is None and n > 1 and cin * tp * isz < target:
        want_nb = -(-target // (cin * tp * isz))
        divs = [d for d in range(1, n + 1) if n % d == 0]
        fit = [d for d in divs if step_bytes(d, tco, tp) <= tile_budget]
        ge = [d for d in fit if d >= want_nb]
        nb = min(ge) if ge else (max(fit) if fit else 1)

    # ---- Keep >=2 grid steps when splittable so both v7x TCs are fed. ------
    def total_steps(nb_, tp_):
        return (n // nb_) * (cout_pad // tco) * (p128 // tp_)
    if total_steps(nb, tp) < 2 and nb > 1:
        smaller = [d for d in range(1, nb) if n % d == 0]
        if smaller:
            nb = max(smaller)
    if total_steps(nb, tp) < 2:
        smaller = [c for c in _lane_divisors(p128) if c < tp]
        if smaller:
            tp = max(smaller)

    # ---- Fold conv bias + eval-mode BN into weight and a single shift. -----
    #   y = SiLU( (W*s) @ x + (b*s + beta - mean*s) ),  s = g / sqrt(v+eps)
    inv_std = jax.lax.rsqrt(bn_var.astype(jnp.float32) + eps)
    bn_scale = bn_gamma.astype(jnp.float32) * inv_std
    w2d = conv_w.reshape(cout, cin).astype(jnp.float32) * bn_scale[:, None]
    shift = (conv_b.astype(jnp.float32) * bn_scale
             + bn_beta.astype(jnp.float32)
             - bn_mean.astype(jnp.float32) * bn_scale)
    # TODO(synk): on v5e with very large Cin/Cout, casting x (and w2d) to bf16
    # here roughly halves HBM traffic and uses the bf16 MXU, if model
    # precision allows.
    w2d = w2d.astype(x.dtype)
    shift2d = shift.reshape(cout, 1)            # keep f32 for the epilogue

    if cout_pad != cout:
        w2d = jnp.pad(w2d, ((0, cout_pad - cout), (0, 0)))
        shift2d = jnp.pad(shift2d, ((0, cout_pad - cout), (0, 0)))
    if p128 != p:
        # TODO(synk): handle the ragged last spatial tile with masked edge
        # stores instead of this (<128-column) pad + slice.
        x3d = jnp.pad(x3d, ((0, 0), (0, 0), (0, p128 - p)))

    # Cout tiles innermost: the x index map ignores j, so the x tile stays
    # resident in VMEM across Cout tiles and only the small weight tile moves.
    grid = (n // nb, p128 // tp, cout_pad // tco)

    cost = pl.CostEstimate(
        flops=2 * n * cout * cin * p,
        transcendentals=2 * n * cout * p,                 # exp + reciprocal
        bytes_accessed=(n * cin * p128 + cout_pad * cin
                        + n * cout_pad * p128) * isz,
    )

    out3d = pl.pallas_call(
        _conv1x1_bn_silu_kernel,
        out_shape=jax.ShapeDtypeStruct((n, cout_pad, p128), x.dtype),
        grid_spec=pltpu.PrefetchScalarGridSpec(
            num_scalar_prefetch=0,
            grid=grid,
            in_specs=[
                pl.BlockSpec((nb, cin, tp), lambda b, i, j: (b, 0, i)),
                pl.BlockSpec((tco, cin), lambda b, i, j: (j, 0)),
                pl.BlockSpec((tco, 1), lambda b, i, j: (j, 0)),
            ],
            out_specs=pl.BlockSpec((nb, tco, tp), lambda b, i, j: (b, j, i)),
        ),
        compiler_params=pltpu.CompilerParams(
            dimension_semantics=("parallel", "parallel", "parallel"),
            vmem_limit_bytes=int(vmem_limit),
        ),
        cost_estimate=cost,
    )(x3d, w2d, shift2d)

    if cout_pad != cout or p128 != p:
        out3d = out3d[:, :cout, :p]
    # Free contiguous reshape back to NCHW (no transpose needed).
    return out3d.reshape(n, cout, ho, wo)


def _reference(x, conv_w, conv_b, bn_gamma, bn_beta, bn_mean, bn_var,
               stride=1, eps=1e-5):
    xs = x[:, :, ::stride, ::stride]
    y = jnp.einsum("nchw,oc->nohw", xs, conv_w.reshape(conv_w.shape[0], -1))
    y = y + conv_b[None, :, None, None]
    y = (y - bn_mean[None, :, None, None]) * jax.lax.rsqrt(
        bn_var[None, :, None, None] + eps) * bn_gamma[None, :, None, None] \
        + bn_beta[None, :, None, None]
    return y * jax.nn.sigmoid(y)


if __name__ == "__main__":
    key = jax.random.PRNGKey(0)
    kx, kw, kb, kg, kbe, km, kv = jax.random.split(key, 7)

    N, Cin, Cout, H, W = 2, 4, 8, 16, 16

    x = jax.random.normal(kx, (N, Cin, H, W), dtype=jnp.float32)
    conv_w = jax.random.normal(kw, (Cout, Cin, 1, 1), dtype=jnp.float32) * 0.1
    conv_b = jax.random.normal(kb, (Cout,), dtype=jnp.float32) * 0.1
    bn_gamma = 1.0 + 0.1 * jax.random.normal(kg, (Cout,), dtype=jnp.float32)
    bn_beta = 0.1 * jax.random.normal(kbe, (Cout,), dtype=jnp.float32)
    bn_mean = 0.1 * jax.random.normal(km, (Cout,), dtype=jnp.float32)
    bn_var = jnp.abs(jax.random.normal(kv, (Cout,), dtype=jnp.float32)) + 0.5

    for stride in (1, 2):
        out = conv1x1_forward(x, conv_w, conv_b, bn_gamma, bn_beta, bn_mean,
                              bn_var, stride=stride)
        out = jax.block_until_ready(out)
        ref = _reference(x, conv_w, conv_b, bn_gamma, bn_beta, bn_mean, bn_var,
                         stride=stride)
        assert out.shape == (N, Cout, (H + stride - 1) // stride,
                             (W + stride - 1) // stride)
        assert jnp.allclose(out, ref, atol=1e-5, rtol=1e-5), \
            f"mismatch at stride={stride}"

    print("KERNEL_OK")
</pallas_src>

<mosaic_0001>
module attributes {stable_mosaic.version = 11 : i64} {
  func.func @_conv1x1_bn_silu_kernel(%arg0: i32, %arg1: i32, %arg2: i32, %arg3: memref<1x4x256xf32, #tpu.memory_space<vmem>>, %arg4: memref<8x4xf32, #tpu.memory_space<vmem>>, %arg5: memref<8x1xf32, #tpu.memory_space<vmem>>, %arg6: memref<1x8x256xf32, #tpu.memory_space<vmem>>) attributes {dimension_semantics = [#tpu.dimension_semantics<parallel>, #tpu.dimension_semantics<parallel>, #tpu.dimension_semantics<parallel>], iteration_bounds = array<i64: 2, 1, 1>, scalar_prefetch = 0 : i64, scratch_operands = 0 : i64, tpu.core_type = #tpu.core_type<tc>, window_params = [{transform_indices = @transform_0, window_bounds = array<i64: 1, 4, 256>}, {transform_indices = @transform_1, window_bounds = array<i64: 8, 4>}, {transform_indices = @transform_2, window_bounds = array<i64: 8, 1>}, {transform_indices = @transform_3, window_bounds = array<i64: 1, 8, 256>}]} {
    %c0 = arith.constant 0 : index
    %c0_0 = arith.constant 0 : index
    %0 = vector.load %arg4[%c0, %c0_0] : memref<8x4xf32, #tpu.memory_space<vmem>>, vector<8x4xf32>
    %c0_1 = arith.constant 0 : index
    %c0_2 = arith.constant 0 : index
    %1 = vector.load %arg5[%c0_1, %c0_2] : memref<8x1xf32, #tpu.memory_space<vmem>>, vector<8x1xf32>
    %c0_3 = arith.constant 0 : index
    %c0_4 = arith.constant 0 : index
    %c0_5 = arith.constant 0 : index
    %2 = vector.load %arg3[%c0_3, %c0_4, %c0_5] : memref<1x4x256xf32, #tpu.memory_space<vmem>>, vector<1x4x256xf32>
    %3 = vector.shape_cast %2 : vector<1x4x256xf32> to vector<4x256xf32>
    %cst = arith.constant dense<0.000000e+00> : vector<8x256xf32>
    %4 = tpu.matmul %0, %3, %cst {dimension_numbers = #tpu.dot_dimension_numbers<[1], [0], [0], [1], [0, 0, 1, 1], [], []>} : vector<8x4xf32>, vector<4x256xf32>, vector<8x256xf32> -> vector<8x256xf32>
    %5 = vector.broadcast %1 : vector<8x1xf32> to vector<8x256xf32>
    %6 = arith.addf %4, %5 : vector<8x256xf32>
    %cst_6 = arith.constant 0.000000e+00 : f32
    %7 = vector.broadcast %cst_6 : f32 to vector<8x256xf32>
    %8 = arith.subf %7, %6 : vector<8x256xf32>
    %9 = math.exp %8 : vector<8x256xf32>
    %cst_7 = arith.constant 1.000000e+00 : f32
    %10 = vector.broadcast %cst_7 : f32 to vector<8x256xf32>
    %11 = arith.addf %10, %9 : vector<8x256xf32>
    %12 = tpu.reciprocal %11 : vector<8x256xf32> -> vector<8x256xf32>
    %13 = arith.mulf %6, %12 : vector<8x256xf32>
    %c0_8 = arith.constant 0 : index
    %c0_9 = arith.constant 0 : index
    %c0_10 = arith.constant 0 : index
    %14 = vector.load %arg6[%c0_8, %c0_9, %c0_10] : memref<1x8x256xf32, #tpu.memory_space<vmem>>, vector<1x8x256xf32>
    %15 = vector.shape_cast %14 : vector<1x8x256xf32> to vector<8x256xf32>
    %16 = vector.shape_cast %13 : vector<8x256xf32> to vector<1x8x256xf32>
    tpu.vector_store %arg6[%c0_8, %c0_9, %c0_10], %16 {strides = array<i32>} : memref<1x8x256xf32, #tpu.memory_space<vmem>>, vector<1x8x256xf32>,
    return
  }
  func.func @transform_0(%arg0: i32, %arg1: i32, %arg2: i32) -> (i32, i32, i32) {
    %c0_i32 = arith.constant 0 : i32
    %c0_i32_0 = arith.constant 0 : i32
    return %arg0, %c0_i32, %arg1 : i32, i32, i32
  }
  func.func @transform_1(%arg0: i32, %arg1: i32, %arg2: i32) -> (i32, i32) {
    %c0_i32 = arith.constant 0 : i32
    %c0_i32_0 = arith.constant 0 : i32
    return %arg2, %c0_i32 : i32, i32
  }
  func.func @transform_2(%arg0: i32, %arg1: i32, %arg2: i32) -> (i32, i32) {
    %c0_i32 = arith.constant 0 : i32
    %c0_i32_0 = arith.constant 0 : i32
    return %arg2, %c0_i32 : i32, i32
  }
  func.func @transform_3(%arg0: i32, %arg1: i32, %arg2: i32) -> (i32, i32, i32) {
    %c0_i32 = arith.constant 0 : i32
    return %arg0, %arg2, %arg1 : i32, i32, i32
  }
}

</mosaic_0001>

<llo_original>
// kernel: conv1x1_forward.1
$region0: #{conv1x1_forward.1}
  #allocation0 [shape = 'u32[]', space=smem, size = 0x4, offset = 0x4, fixed_abs, tag = 'smem constant byte address 0x4 - core index']
  #allocation1 [shape = 'u32[72,128]{1,0:T(1,128)}', space=vmem, size = 0x9000, scoped, tag = 'internal scratch']
  %s0 = inlined_call_operand.vmem [shape: f32[2,4,256], index: 0, kind: input, shape index: {}]
  %s1 = inlined_call_operand.vmem [shape: f32[8,4], index: 1, kind: input, shape index: {}]
  %s2 = inlined_call_operand.vmem [shape: f32[8,1], index: 2, kind: input, shape index: {}]
  %s3 = inlined_call_operand.vmem [shape: f32[2,8,256], index: 3, kind: output, shape index: {}]
  %s4 = sld [smem:[#allocation0]]
  $region45: #{conv1x1_forward.1} parent=0
    _
  %s6 = ssub.s32 1, %s4
  %s7 = scalar_select 0, %s6, %s4
  loop: start=0, step=1, limit=4
  $region2: #{conv1x1_forward.1} parent=0 // loop_pre_header
    _
  $region3: #{conv1x1_forward.1} parent=0 // loop_header
    %s9 = sphi 0, %s13
    %p10 = scmp.ge.s32.totalorder %s9, 4
    %s16 = sphi 0, %s35
    %s17 = sphi 0, %s31
    %s18 = sphi 0, %s27
    %s19 = sphi 0, %s16
    %s20 = sphi 0, %s17
    %s21 = sphi 0, %s18
    %s22 = sphi 0, %s19
    %s23 = sphi 0, %s20
    %s24 = sphi 0, %s21
    %s40 = sphi 0, %s42
    %s43 = sphi 0, %s40
    %s44 = sphi 0, %s43
    %s60 = sphi 0, %s44
    %s66 = sphi 0, %s68
    %s69 = sphi 0, %s66
    %s70 = sphi 0, %s69
    %s86 = sphi 0, %s70
    %s92 = sphi 0, %s94
    %s95 = sphi 0, %s92
    %s96 = sphi 0, %s95
    %s112 = sphi 0, %s96
    %s122 = sphi 0, %s124
    %s125 = sphi 0, %s122
    %s126 = sphi 0, %s125
    %s142 = sphi 0, %s126
  $region4: #{conv1x1_forward.1} parent=0 // loop_header_branch
    %12 = sbr.rel (%p10) target = $region8
  $region5: #{conv1x1_forward.1} parent=0 // loop_body
    %s14 = ssub.s32 %s9, 1
    %s15 = ssub.s32 %s9, 2
    %s25 = sadd.s32 1, %s18
    %p26 = scmp.ge.s32.totalorder %s25, 1
    %s27 = scalar_select %p26, 0, %s25
    %s28 = sadd.s32 1, %s17
    %s29 = scalar_select %p26, %s28, %s17
    %p30 = scmp.ge.s32.totalorder %s29, 1
    %s31 = scalar_select %p30, 0, %s29
    %s32 = sadd.s32 1, %s16
    %s33 = scalar_select %p30, %s32, %s16
    %p34 = scmp.ge.s32.totalorder %s33, 2
    %s35 = scalar_select %p34, 0, %s33
    %s36 = ssub.s32 %s16, %s35
    %s37 = ssub.s32 %s17, %s31
    %s38 = sor.u32 %s36, %s37
    %p39 = scmp.eq.s32.totalorder %s38, 0
    %s41 = sadd.s32 %s40, 1
    %s42 = scalar_select %p39, %s40, %s41
    %p45 = pneg %p39
    %p46 = scmp.eq.s32.totalorder %s9, 1
    %p47 = por %p45, %p46
    %p48 = scmp.ne.s32.totalorder %s40, %s43
    %p49 = scmp.eq.s32.totalorder %s9, 0
    %p50 = por %p48, %p49
    %p51 = scmp.ne.s32.totalorder %s40, %s43
    %p52 = scmp.eq.s32.totalorder %s14, 1
    %p53 = por %p51, %p52
    %p54 = scmp.ne.s32.totalorder %s43, %s44
    %p55 = scmp.eq.s32.totalorder %s14, 0
    %p56 = por %p54, %p55
    %p57 = scmp.ne.s32.totalorder %s43, %s44
    %p58 = scmp.eq.s32.totalorder %s15, 1
    %p59 = por %p57, %p58
    %p61 = scmp.ne.s32.totalorder %s44, %s60
    %p62 = scmp.eq.s32.totalorder %s15, 0
    %p63 = por %p61, %p62
    %s64 = ssub.s32 %s18, %s27
    %p65 = scmp.eq.s32.totalorder %s64, 0
    %s67 = sadd.s32 %s66, 1
    %s68 = scalar_select %p65, %s66, %s67
    %p71 = pneg %p65
    %p72 = scmp.eq.s32.totalorder %s9, 1
    %p73 = por %p71, %p72
    %p74 = scmp.ne.s32.totalorder %s66, %s69
    %p75 = scmp.eq.s32.totalorder %s9, 0
    %p76 = por %p74, %p75
    %p77 = scmp.ne.s32.totalorder %s66, %s69
    %p78 = scmp.eq.s32.totalorder %s14, 1
    %p79 = por %p77, %p78
    %p80 = scmp.ne.s32.totalorder %s69, %s70
    %p81 = scmp.eq.s32.totalorder %s14, 0
    %p82 = por %p80, %p81
    %p83 = scmp.ne.s32.totalorder %s69, %s70
    %p84 = scmp.eq.s32.totalorder %s15, 1
    %p85 = por %p83, %p84
    %p87 = scmp.ne.s32.totalorder %s70, %s86
    %p88 = scmp.eq.s32.totalorder %s15, 0
    %p89 = por %p87, %p88
    %s90 = ssub.s32 %s18, %s27
    %p91 = scmp.eq.s32.totalorder %s90, 0
    %s93 = sadd.s32 %s92, 1
    %s94 = scalar_select %p91, %s92, %s93
    %p97 = pneg %p91
    %p98 = scmp.eq.s32.totalorder %s9, 1
    %p99 = por %p97, %p98
    %p100 = scmp.ne.s32.totalorder %s92, %s95
    %p101 = scmp.eq.s32.totalorder %s9, 0
    %p102 = por %p100, %p101
    %p103 = scmp.ne.s32.totalorder %s92, %s95
    %p104 = scmp.eq.s32.totalorder %s14, 1
    %p105 = por %p103, %p104
    %p106 = scmp.ne.s32.totalorder %s95, %s96
    %p107 = scmp.eq.s32.totalorder %s14, 0
    %p108 = por %p106, %p107
    %p109 = scmp.ne.s32.totalorder %s95, %s96
    %p110 = scmp.eq.s32.totalorder %s15, 1
    %p111 = por %p109, %p110
    %p113 = scmp.ne.s32.totalorder %s96, %s112
    %p114 = scmp.eq.s32.totalorder %s15, 0
    %p115 = por %p113, %p114
    %s116 = ssub.s32 %s16, %s35
    %s117 = ssub.s32 %s18, %s27
    %s118 = sor.u32 %s116, %s117
    %s119 = ssub.s32 %s17, %s31
    %s120 = sor.u32 %s118, %s119
    %p121 = scmp.eq.s32.totalorder %s120, 0
    %s123 = sadd.s32 %s122, 1
    %s124 = scalar_select %p121, %s122, %s123
    %p127 = pneg %p121
    %p128 = scmp.eq.s32.totalorder %s9, 1
    %p129 = por %p127, %p128
    %p130 = scmp.ne.s32.totalorder %s122, %s125
    %p131 = scmp.eq.s32.totalorder %s9, 0
    %p132 = por %p130, %p131
    %p133 = scmp.ne.s32.totalorder %s122, %s125
    %p134 = scmp.eq.s32.totalorder %s14, 1
    %p135 = por %p133, %p134
    %p136 = scmp.ne.s32.totalorder %s125, %s126
    %p137 = scmp.eq.s32.totalorder %s14, 0
    %p138 = por %p136, %p137
    %p139 = scmp.ne.s32.totalorder %s125, %s126
    %p140 = scmp.eq.s32.totalorder %s15, 1
    %p141 = por %p139, %p140
    %p143 = scmp.ne.s32.totalorder %s126, %s142
    %p144 = scmp.eq.s32.totalorder %s15, 0
    %p145 = por %p143, %p144
    %p146 = scmp.le.s32.totalorder 1, %s9
    %p147 = scmp.lt.s32.totalorder %s9, 3
    %p148 = pnand %p146, %p147
    %p149 = pneg %p148
    // Predicated region
    $region9: #{conv1x1_forward.1} parent=5 // pred_check
      _
    $region10: #{conv1x1_forward.1} parent=5 // pred_check_branch
      %151 = sbr.rel (%p148) target = $region12
    $region11: #{conv1x1_forward.1} parent=5 // pred_region
      %s152 = ssub.s32 %s9, 1
      // Predicated region
      $region13: #{conv1x1_forward.1} parent=11 // pred_check
        %p153 = pneg %p82
      $region14: #{conv1x1_forward.1} parent=11 // pred_check_branch
        %155 = sbr.rel (%p153) target = $region16
      $region15: #{conv1x1_forward.1} parent=11 // pred_region
        %p156 = scmp.lt.s32.totalorder %s21, 0
        %s157 = scalar_select %p156, %s21, 0
        %s158 = smul.addr %s157, 8
        %s159 = scalar_lea.vmem %s1, %s158
      $region16: #{conv1x1_forward.1} parent=11 // pred_fallthru
        _
      // Predicated region
      $region17: #{conv1x1_forward.1} parent=11 // pred_check
        %p160 = pneg %p108
      $region18: #{conv1x1_forward.1} parent=11 // pred_check_branch
        %162 = sbr.rel (%p160) target = $region20
      $region19: #{conv1x1_forward.1} parent=11 // pred_region
        %p163 = scmp.lt.s32.totalorder %s21, 0
        %s164 = scalar_select %p163, %s21, 0
        %s165 = smul.addr %s164, 8
        %s166 = scalar_lea.vmem %s2, %s165
      $region20: #{conv1x1_forward.1} parent=11 // pred_fallthru
        _
    $region12: #{conv1x1_forward.1} parent=5 // pred_fallthru
      _
    %p167 = scmp.lt.s32.totalorder %s9, 2
    // Predicated region
    $region21: #{conv1x1_forward.1} parent=5 // pred_check
      %p168 = pneg %p167
    $region22: #{conv1x1_forward.1} parent=5 // pred_check_branch
      %170 = sbr.rel (%p168) target = $region24
    $region23: #{conv1x1_forward.1} parent=5 // pred_region
      // Predicated region
      $region25: #{conv1x1_forward.1} parent=23 // pred_check
        %p171 = pneg %p50
      $region26: #{conv1x1_forward.1} parent=23 // pred_check_branch
        %173 = sbr.rel (%p171) target = $region28
      $region27: #{conv1x1_forward.1} parent=23 // pred_region
        %s174 = smul.u32 2, %s17
        %p175 = scmp.lt.s32.totalorder %s16, 1
        %s176 = scalar_select %p175, %s16, 1
        %p177 = scmp.lt.s32.totalorder %s174, 1
        %s178 = scalar_select %p177, %s174, 1
        %s179 = smul.addr %s176, 2
        %s180 = sadd.s32 %s178, %s179
        %s181 = smul.addr %s180, 4
        %s182 = scalar_lea.vmem %s0, %s181
        %s183 = smul.u32 2, %s17
      $region28: #{conv1x1_forward.1} parent=23 // pred_fallthru
        _
    $region24: #{conv1x1_forward.1} parent=5 // pred_fallthru
      _
    %p184 = scmp.le.s32.totalorder 1, %s9
    %p185 = scmp.lt.s32.totalorder %s9, 3
    %p186 = pnand %p184, %p185
    %p187 = pneg %p186
    // Predicated region
    $region29: #{conv1x1_forward.1} parent=5 // pred_check
      _
    $region30: #{conv1x1_forward.1} parent=5 // pred_check_branch
      %189 = sbr.rel (%p186) target = $region32
    $region31: #{conv1x1_forward.1} parent=5 // pred_region
      %s190 = ssub.s32 %s9, 1
      %s191 = smul.u32 2, %s20
      %p192 = scmp.lt.s32.totalorder %s19, 1
      %s193 = scalar_select %p192, %s19, 1
      %p194 = scmp.lt.s32.totalorder %s191, 1
      %s195 = scalar_select %p194, %s191, 1
      %s196 = smul.addr %s193, 2
      %s197 = sadd.s32 %s195, %s196
      %s198 = smul.addr %s197, 4
      %s199 = scalar_lea.vmem %s0, %s198
      %p200 = pneg %p56
      %p201 = pneg %p53
      %p202 = scmp.lt.s32.totalorder %s21, 0
      %s203 = scalar_select %p202, %s21, 0
      %s204 = smul.addr %s203, 8
      %s205 = scalar_lea.vmem %s1, %s204
      %p206 = pneg %p82
      %p207 = pneg %p79
      %p208 = scmp.lt.s32.totalorder %s21, 0
      %s209 = scalar_select %p208, %s21, 0
      %s210 = smul.addr %s209, 8
      %s211 = scalar_lea.vmem %s2, %s210
      %p212 = pneg %p108
      %p213 = pneg %p105
      %p214 = pneg %p138
      %p215 = pneg %p135
      %s216 = smul.u32 2, %s20
      %p217 = scmp.lt.s32.totalorder %s19, 1
      %s218 = scalar_select %p217, %s19, 1
      %p219 = scmp.lt.s32.totalorder %s21, 0
      %s220 = scalar_select %p219, %s21, 0
      %p221 = scmp.lt.s32.totalorder %s216, 1
      %s222 = scalar_select %p221, %s216, 1
      %s223 = smul.addr %s220, 2
      %s224 = sadd.s32 %s222, %s223
      %s225 = smul.addr %s218, 2
      %s226 = sadd.s32 %s224, %s225
      %s227 = smul.addr %s226, 8
      %s228 = scalar_lea.vmem %s3, %s227
      %s229 = smul.u32 2, %s20
      %p230 = scmp.lt.s32.totalorder %s19, 1
      %s231 = scalar_select %p230, %s19, 1
      %p232 = scmp.lt.s32.totalorder %s229, 1
      %s233 = scalar_select %p232, %s229, 1
      %s234 = smul.addr %s231, 2
      %s235 = sadd.s32 %s233, %s234
      %s236 = smul.addr %s235, 4
      %s237 = scalar_lea.vmem %s0, %s236
      %s238 = smul.u32 2, %s20
      %p239 = scmp.lt.s32.totalorder %s21, 0
      %s240 = scalar_select %p239, %s21, 0
      %s241 = smul.addr %s240, 8
      %s242 = scalar_lea.vmem %s1, %s241
      %p243 = scmp.lt.s32.totalorder %s21, 0
      %s244 = scalar_select %p243, %s21, 0
      %s245 = smul.addr %s244, 8
      %s246 = scalar_lea.vmem %s2, %s245
      %s247 = smul.u32 2, %s20
      %p248 = scmp.lt.s32.totalorder %s19, 1
      %s249 = scalar_select %p248, %s19, 1
      %p250 = scmp.lt.s32.totalorder %s21, 0
      %s251 = scalar_select %p250, %s21, 0
      %p252 = scmp.lt.s32.totalorder %s247, 1
      %s253 = scalar_select %p252, %s247, 1
      %s254 = smul.addr %s251, 2
      %s255 = sadd.s32 %s253, %s254
      %s256 = smul.addr %s249, 2
      %s257 = sadd.s32 %s255, %s256
      %s258 = smul.addr %s257, 8
      %s259 = scalar_lea.vmem %s3, %s258
      %s260 = smul.u32 2, %s20
      %v261 = vld [vmem:[%s242] sm:$0xff]
      %v262 = vld [vmem:[%s246] sm:$0xff]
      %v263 = vld [vmem:[%s237] sm:$0xff]
      %265 = vset.pattern.permute.xlu0 0
      %266 = vperm.xlu0 %265, %v262
      %v267 = vpop.permute.xlu0 %266
      %270 = vst [vmem:[#allocation1] ss:$2 sm:$0xff] %v263
      %v271 = vld.sshfl [vmem:[#allocation1] sm:$0xff pattern:$0x75316420]
      %v272 = vld.sshfl [vmem:[#allocation1 + $0x8] sm:$0xff pattern:$0x75316420]
      %vm273 = vcmask 31744
      %v275 = vsel %vm273, %v261, 0
      %vm277 = vcmask 1043456
      %v278 = vsel %vm277, %v271, 0
      %v280 = vsel %vm277, %v272, 0
      %282 = vmatpush.msra.mxu0 0.0
      %283 = vmatpush.msra.mxu0 0.0
      %284 = vmatpush.msra.mxu0 0.0
      %285 = vmatpush.msra.mxu0 0.0
      %286 = vmatpush.msra.mxu0 0.0
      %287 = vmatpush.msra.mxu0 0.0
      %288 = vmatpush.msra.mxu0 0.0
      %289 = vmatpush.msra.mxu0 0.0
      %290 = vmatpush.msra.mxu0 0.0
      %291 = vmatpush.msra.mxu0 0.0
      %292 = vmatpush.msra.mxu0 0.0
      %293 = vmatpush.msra.mxu0 0.0
      %294 = vmatpush.msra.mxu0 0.0
      %295 = vmatpush.msra.mxu0 0.0
      %296 = vmatpush.msra.mxu0 0.0
      %297 = vmatpush.msra.mxu0 %v278
      %298 = vmatmul.f32.gmra.mxu0 %v275
      %v299 = vpop.f32.mrf.mxu0
      %v300 = vadd.f32 %v267, %v299
      %301 = vdwg.mxu0
      %302 = vmatpush.msra.mxu0 0.0
      %303 = vmatpush.msra.mxu0 0.0
      %304 = vmatpush.msra.mxu0 0.0
      %305 = vmatpush.msra.mxu0 0.0
      %306 = vmatpush.msra.mxu0 0.0
      %307 = vmatpush.msra.mxu0 0.0
      %308 = vmatpush.msra.mxu0 0.0
      %309 = vmatpush.msra.mxu0 0.0
      %310 = vmatpush.msra.mxu0 0.0
      %311 = vmatpush.msra.mxu0 0.0
      %312 = vmatpush.msra.mxu0 0.0
      %313 = vmatpush.msra.mxu0 0.0
      %314 = vmatpush.msra.mxu0 0.0
      %315 = vmatpush.msra.mxu0 0.0
      %316 = vmatpush.msra.mxu0 0.0
      %317 = vmatpush.msra.mxu0 %v280
      %318 = vmatmul.f32.gmra.mxu0 %v275
      %v319 = vpop.f32.mrf.mxu0
      %v320 = vadd.f32 %v267, %v319
      %321 = vdwg.mxu0
      %v322 = vsub.f32 0.0, %v300
      %v323 = vsub.f32 0.0, %v320
      %v324 = vmul.f32 %v322, 1.442695
      %v325 = vpow.pop %v324
      %v326 = vmul.f32 %v323, 1.442695
      %v327 = vpow.pop %v326
      %v328 = vadd.f32 %v325, 1.0
      %v329 = vadd.f32 %v327, 1.0
      %v330 = vrcp.pop %v328
      %v331 = vmul.f32 %v328, %v330
      %v332 = vsub.f32 1.0, %v331
      %v333 = vmul.f32 %v330, %v332
      %v334 = vadd.f32 %v330, %v333
      %vm335 = vweird.f32 %v328
      %vm336 = vweird.f32 %v330
      %vm337 = vmor %vm335, %vm336
      %v338 = vsel %vm337, %v330, %v334
      %v339 = vand.u32 2147483647, %v328
      %vm340 = vcmp.eq.f32.partialorder %v339, 8.507059e+37
      %v341 = vand.u32 %v328, 2147483648
      %v342 = vor.u32 1.1754944e-38, %v341
      %v343 = vsel %vm340, %v342, %v338
      %v344 = vrcp.pop %v329
      %v345 = vmul.f32 %v329, %v344
      %v346 = vsub.f32 1.0, %v345
      %v347 = vmul.f32 %v344, %v346
      %v348 = vadd.f32 %v344, %v347
      %vm349 = vweird.f32 %v329
      %vm350 = vweird.f32 %v344
      %vm351 = vmor %vm349, %vm350
      %v352 = vsel %vm351, %v344, %v348
      %v353 = vand.u32 2147483647, %v329
      %vm354 = vcmp.eq.f32.partialorder %v353, 8.507059e+37
      %v355 = vand.u32 %v329, 2147483648
      %v356 = vor.u32 1.1754944e-38, %v355
      %v357 = vsel %vm354, %v356, %v352
      %v358 = vmul.f32 %v300, %v343
      %v359 = vmul.f32 %v320, %v357
      %360 = vst [vmem:[%s259] sm:$0xff] %v358
      %361 = vst [vmem:[%s259 + $0x8] sm:$0xff] %v359
      %s362 = smul.u32 2, %s20
      %p363 = scmp.lt.s32.totalorder %s19, 1
      %s364 = scalar_select %p363, %s19, 1
      %p365 = scmp.lt.s32.totalorder %s21, 0
      %s366 = scalar_select %p365, %s21, 0
      %p367 = scmp.lt.s32.totalorder %s362, 1
      %s368 = scalar_select %p367, %s362, 1
      %s369 = smul.addr %s366, 2
      %s370 = sadd.s32 %s368, %s369
      %s371 = smul.addr %s364, 2
      %s372 = sadd.s32 %s370, %s371
      %s373 = smul.addr %s372, 8
      %s374 = scalar_lea.vmem %s3, %s373
      // Predicated region
      $region33: #{conv1x1_forward.1} parent=31 // pred_check
        %p375 = pneg %p135
      $region34: #{conv1x1_forward.1} parent=31 // pred_check_branch
        %377 = sbr.rel (%p375) target = $region36
      $region35: #{conv1x1_forward.1} parent=31 // pred_region
        %s378 = smul.u32 2, %s20
      $region36: #{conv1x1_forward.1} parent=31 // pred_fallthru
        _
    $region32: #{conv1x1_forward.1} parent=5 // pred_fallthru
      _
    %p379 = scmp.le.s32.totalorder 2, %s9
    // Predicated region
    $region37: #{conv1x1_forward.1} parent=5 // pred_check
      %p380 = pneg %p379
    $region38: #{conv1x1_forward.1} parent=5 // pred_check_branch
      %382 = sbr.rel (%p380) target = $region40
    $region39: #{conv1x1_forward.1} parent=5 // pred_region
      %s383 = ssub.s32 %s9, 2
      // Predicated region
      $region41: #{conv1x1_forward.1} parent=39 // pred_check
        %p384 = pneg %p141
      $region42: #{conv1x1_forward.1} parent=39 // pred_check_branch
        %386 = sbr.rel (%p384) target = $region44
      $region43: #{conv1x1_forward.1} parent=39 // pred_region
        %s387 = smul.u32 2, %s23
        %p388 = scmp.lt.s32.totalorder %s22, 1
        %s389 = scalar_select %p388, %s22, 1
        %p390 = scmp.lt.s32.totalorder %s24, 0
        %s391 = scalar_select %p390, %s24, 0
        %p392 = scmp.lt.s32.totalorder %s387, 1
        %s393 = scalar_select %p392, %s387, 1
        %s394 = smul.addr %s391, 2
        %s395 = sadd.s32 %s393, %s394
        %s396 = smul.addr %s389, 2
        %s397 = sadd.s32 %s395, %s396
        %s398 = smul.addr %s397, 8
        %s399 = scalar_lea.vmem %s3, %s398
      $region44: #{conv1x1_forward.1} parent=39 // pred_fallthru
        _
    $region40: #{conv1x1_forward.1} parent=5 // pred_fallthru
      _
  $region6: #{conv1x1_forward.1} parent=0 // loop_footer
    %s13 = sadd.s32 1, %s9
  $region7: #{conv1x1_forward.1} parent=0 // loop_footer_branch
    %8 = sbr.rel target = $region3
  $region8: #{conv1x1_forward.1} parent=0 // loop_exit
    _

</llo_original>
